<compile_context>
chip_gen: v5e
topology: v5e:2x2
jax: 0.10.0
libtpu: 0.0.40
codegen_flags: <defaults>
</compile_context>

<pallas_src>
from functools import partial

import jax
import jax.numpy as jnp
from jax import lax
from jax.experimental import pallas as pl
from jax.experimental.pallas import tpu as pltpu


def _round_up(x, m):
    return ((x + m - 1) // m) * m


def _pick_vmem_limit_bytes():
    """Per-generation VMEM budget: <=48 MiB on 64-MiB parts (v7x), 64 MiB else."""
    cap = None
    try:
        cap = getattr(pltpu.get_tpu_info(), "vmem_capacity_bytes", None)
    except Exception:
        cap = None
    if cap is None:
        cap = 128 * 1024 * 1024
    if cap <= 96 * 1024 * 1024:
        return 48 * 1024 * 1024
    return 64 * 1024 * 1024


def _packed_score_keys(score, c):
    """int32 keys monotone in `score` (finite f32) with (c-1-index) packed into
    the low ceil(log2(c)) bits, so a single jnp.max over the codebook axis gives
    the first-max (smallest-index) winner, torch.max-style."""
    lgc = max(1, (c - 1).bit_length())
    low = jnp.int32((1 << lgc) - 1)
    bits = lax.bitcast_convert_type(score, jnp.int32)
    # Total order on finite floats under signed int comparison.
    key = jnp.where(bits < 0, bits ^ jnp.int32(0x7FFFFFFF), bits)
    idx = lax.broadcasted_iota(jnp.int32, score.shape, 0)
    packed = (key & ~low) | (jnp.int32(c - 1) - idx)
    return packed, low


def _codebook_kernel(m_total, tpc, training, needs_mask, *refs):
    if training:
        x_ref, e2_ref, esq_ref, ind_ref, cs_ref, ea_ref = refs
    else:
        x_ref, e2_ref, esq_ref, ind_ref = refs

    core = pl.program_id(0)
    j = pl.program_id(1)
    tile = core * tpc + j          # logical (unclamped) token-tile index

    tm, _ = x_ref.shape
    c = e2_ref.shape[0]

    # Stream the token tile straight to bf16 (no f32 round-trip).  Zero the
    # ragged-tail / phantom-tile rows so padding garbage (NaN in interpret
    # mode) can never reach the statistics matmul (0 * NaN = NaN otherwise).
    x_bf = x_ref[...].astype(jnp.bfloat16)                          # (TM, D)
    if needs_mask:
        row_iota = lax.broadcasted_iota(jnp.int32, (tm, 1), 0)
        row_valid = (tile * tm + row_iota) < m_total
        x_bf = jnp.where(row_valid, x_bf, jnp.zeros_like(x_bf))

    # score_ij = 2 x_j . e_i - |e_i|^2  (the per-token |x|^2 term cannot change
    # the argmax).  The factor 2 is folded into the hoisted bf16 codebook;
    # bf16 operands, fp32 MXU accumulation, transposed (C, TM) layout.
    score = lax.dot_general(e2_ref[...], x_bf, (((1,), (1,)), ((), ())),
                            preferred_element_type=jnp.float32) - esq_ref[...]

    # Single-reduction packed argmax over the codebook (sublane) axis.
    packed, low = _packed_score_keys(score, c)
    best = jnp.max(packed, axis=0, keepdims=True)                   # (1, TM)
    ind_row = jnp.int32(c - 1) - (best & low)                       # (1, TM)
    ind_ref[...] = ind_row.reshape(ind_ref.shape)                   # lane-dense

    if not training:
        return

    # ---- per-core raw partial statistics (decay/smoothing done in epilogue) --
    ind_stats = ind_row
    if needs_mask:
        col_iota = lax.broadcasted_iota(jnp.int32, (1, tm), 1)
        col_valid = (tile * tm + col_iota) < m_total
        ind_stats = jnp.where(col_valid, ind_row, jnp.int32(c))     # no match

    code_iota = lax.broadcasted_iota(jnp.int32, (c, tm), 0)
    onehot = code_iota == ind_stats                                  # (C, TM)

    @pl.when(j == 0)
    def _init():
        cs_ref[...] = jnp.zeros_like(cs_ref)
        ea_ref[...] = jnp.zeros_like(ea_ref)

    bins = jnp.sum(onehot.astype(jnp.float32), axis=1, keepdims=True)  # (C, 1)
    cs_ref[...] += bins.reshape(cs_ref.shape)

    esum = lax.dot_general(onehot.astype(jnp.bfloat16), x_bf,
                           (((1,), (0,)), ((), ())),
                           preferred_element_type=jnp.float32)         # (C, D)
    ea_ref[...] += esum.reshape(ea_ref.shape)


@partial(jax.jit, static_argnames=("decay", "eps", "training", "tile_m"))
def euclidean_codebook_forward(x, embed, cluster_size, embed_avg,
                               decay=0.8, eps=1e-5, training=True, tile_m=4096):
    """Returns ((quantize, embed_ind), (new_embed, new_cluster_size, new_embed_avg))."""
    shape = x.shape
    d = shape[-1]
    flatten = x.reshape(-1, d)
    m = flatten.shape[0]
    c = embed.shape[0]
    x_item = jnp.dtype(x.dtype).itemsize

    vmem_limit = _pick_vmem_limit_bytes()

    # Tile-size cap: ~6 live (C, TM) 4-byte temporaries (score / key / packed /
    # iota / onehot) plus the double-buffered x tile; leave headroom for the
    # resident codebook and (training) per-core partial-stat blocks.
    resident = 2 * (c * d * 2 + c * 4)                  # 2*embed (bf16) + |e|^2
    if training:
        resident += 2 * (c * 4 + c * d * 4)             # partial bins + esum
    budget = max(vmem_limit - resident - (4 << 20), 4 << 20)
    per_token = 24 * c + (2 * x_item + 2) * d + 16
    tm_cap = max(128, min(8192, (budget // per_token) // 128 * 128))

    tm = max(128, min(int(tile_m), _round_up(m, 128), tm_cap))
    tm = _round_up(tm, 128)
    n_tiles = pl.cdiv(m, tm)
    n_core = 2 if (training and n_tiles >= 2) else 1     # megacore split (v7x)
    tpc = pl.cdiv(n_tiles, n_core)
    total_tiles = n_core * tpc
    needs_mask = (total_tiles * tm) != m

    # Hoisted loop-invariant codebook work.
    e_f32 = embed.astype(jnp.float32)
    e2_bf = (2.0 * e_f32).astype(jnp.bfloat16)                     # (C, D)
    e_sq = jnp.sum(e_f32 * e_f32, axis=-1, keepdims=True)          # (C, 1) f32

    def x_index(core, j):
        t = core * tpc + j
        return (jnp.minimum(t, n_tiles - 1), 0)   # clamp phantom tiles (masked)

    in_specs = [
        pl.BlockSpec((tm, d), x_index),
        pl.BlockSpec((c, d), lambda core, j: (0, 0)),
        pl.BlockSpec((c, 1), lambda core, j: (0, 0)),
    ]
    inputs = [flatten, e2_bf, e_sq]

    out_shape = [jax.ShapeDtypeStruct((total_tiles, 1, tm), jnp.int32)]
    out_specs = [pl.BlockSpec((1, 1, tm), lambda core, j: (core * tpc + j, 0, 0))]
    if training:
        out_shape += [jax.ShapeDtypeStruct((n_core, c, 1), jnp.float32),
                      jax.ShapeDtypeStruct((n_core, c, d), jnp.float32)]
        out_specs += [pl.BlockSpec((1, c, 1), lambda core, j: (core, 0, 0)),
                      pl.BlockSpec((1, c, d), lambda core, j: (core, 0, 0))]

    kernel = partial(_codebook_kernel, m, tpc, training, needs_mask)

    cost = pl.CostEstimate(
        flops=(4 if training else 2) * m * c * d,
        transcendentals=0,
        bytes_accessed=(m * d * x_item + total_tiles * tm * 4
                        + c * d * (2 + (8 if training else 0)) + c * 8))

    outs = pl.pallas_call(
        kernel,
        out_shape=tuple(out_shape),
        grid=(n_core, tpc),
        in_specs=in_specs,
        out_specs=tuple(out_specs),
        compiler_params=pltpu.CompilerParams(
            dimension_semantics=("parallel", "arbitrary") if training
            else ("parallel", "parallel"),
            vmem_limit_bytes=vmem_limit),
        cost_estimate=cost,
    )(*inputs)

    ind_flat = outs[0].reshape(-1)[:m]
    embed_ind = ind_flat.reshape(shape[:-1])
    # Codebook lookup (F.embedding) as an XLA epilogue: exact rows, no fp32
    # matmul inside the kernel.
    quantize = jnp.take(e_f32, ind_flat, axis=0, mode="clip").reshape(shape)
    quantize = quantize.astype(x.dtype)

    if not training:
        return (quantize, embed_ind), (embed, cluster_size, embed_avg)

    # ---- EMA / Laplace smoothing / embed update epilogue (tiny XLA) ----------
    bins = jnp.sum(outs[1], axis=0).reshape(c)                      # (C,)
    esum = jnp.sum(outs[2], axis=0)                                 # (C, D)
    cs_new = decay * cluster_size.astype(jnp.float32) + (1.0 - decay) * bins
    ea_new = decay * embed_avg.astype(jnp.float32) + (1.0 - decay) * esum
    n = jnp.sum(cs_new)
    cs_sm = (cs_new + eps) / (n + c * eps) * n
    e_new = ea_new / cs_sm[:, None]
    return (quantize, embed_ind), (e_new, cs_new, ea_new)


def _reference_forward(x, embed, cluster_size, embed_avg, decay=0.8, eps=1e-5):
    """Pure-JAX reference mirroring the kernel numerics (bf16 MXU operands with
    fp32 accumulation, folded 2*embed operand, packed-key argmax tie-break)."""
    shape = x.shape
    d = shape[-1]
    flat = x.reshape(-1, d)
    c = embed.shape[0]
    e_f32 = embed.astype(jnp.float32)
    e2_bf = (2.0 * e_f32).astype(jnp.bfloat16)
    e_sq = jnp.sum(e_f32 * e_f32, axis=-1, keepdims=True)            # (C, 1)
    x_bf = flat.astype(jnp.bfloat16)

    score = lax.dot_general(e2_bf, x_bf, (((1,), (1,)), ((), ())),
                            preferred_element_type=jnp.float32) - e_sq   # (C, M)
    packed, low = _packed_score_keys(score, c)
    ind = jnp.int32(c - 1) - (jnp.max(packed, axis=0) & low)         # (M,)
    quantize = jnp.take(e_f32, ind, axis=0).reshape(shape).astype(x.dtype)

    onehot = lax.broadcasted_iota(jnp.int32, score.shape, 0) == ind[None, :]
    bins = jnp.sum(onehot.astype(jnp.float32), axis=1)               # (C,)
    esum = lax.dot_general(onehot.astype(jnp.bfloat16), x_bf,
                           (((1,), (0,)), ((), ())),
                           preferred_element_type=jnp.float32)       # (C, D)

    cs_new = decay * cluster_size.astype(jnp.float32) + (1.0 - decay) * bins
    ea_new = decay * embed_avg.astype(jnp.float32) + (1.0 - decay) * esum
    n = jnp.sum(cs_new)
    cs_sm = (cs_new + eps) / (n + c * eps) * n
    e_new = ea_new / cs_sm[:, None]
    return (quantize, ind.reshape(shape[:-1])), (e_new, cs_new, ea_new)


if __name__ == "__main__":
    # Module params: dim=32, codebook_size=128 (kmeans_init=False -> embed ~ randn)
    dim, codebook_size = 32, 128
    key = jax.random.PRNGKey(0)
    k_embed, k_x, k_x2 = jax.random.split(key, 3)

    embed = jax.random.normal(k_embed, (codebook_size, dim), dtype=jnp.float32)
    cluster_size = jnp.zeros((codebook_size,), dtype=jnp.float32)
    embed_avg = embed.copy()

    # x: (batch=2, seq=8, dim=32), channels-last
    x = jax.random.normal(k_x, (2, 8, dim), dtype=jnp.float32)

    (quantize, embed_ind), (e_new, cs_new, ea_new) = euclidean_codebook_forward(
        x, embed, cluster_size, embed_avg, decay=0.8, eps=1e-5, training=True)
    jax.block_until_ready((quantize, embed_ind, e_new, cs_new, ea_new))

    (q_ref, ind_ref), (e_ref, cs_ref, ea_ref) = _reference_forward(
        x, embed, cluster_size, embed_avg)

    assert quantize.shape == x.shape and embed_ind.shape == x.shape[:-1]
    assert jnp.array_equal(embed_ind.astype(jnp.int32), ind_ref.astype(jnp.int32))
    assert jnp.allclose(quantize, q_ref, atol=1e-5, rtol=1e-5)
    assert jnp.allclose(cs_new, cs_ref, atol=1e-4, rtol=1e-4)
    assert jnp.allclose(ea_new, ea_ref, atol=1e-3, rtol=1e-3)
    assert jnp.allclose(e_new, e_ref, atol=1e-3, rtol=1e-3)

    # inference path: no EMA work inside the kernel
    (q_eval, ind_eval), _ = euclidean_codebook_forward(
        x, embed, cluster_size, embed_avg, training=False)
    jax.block_until_ready((q_eval, ind_eval))
    assert jnp.array_equal(ind_eval, embed_ind)
    assert jnp.allclose(q_eval, quantize, atol=1e-6, rtol=1e-6)

    # multi-tile path: 3 real tiles split over a 2-way core axis (one phantom
    # tile) plus a ragged tail -> exercises masked statistics, the megacore
    # partial-stat split and the XLA combine epilogue.
    x_big = jax.random.normal(k_x2, (5, 119, dim), dtype=jnp.float32)
    (q2, ind2), (e2n, cs2, ea2) = euclidean_codebook_forward(
        x_big, embed, cluster_size, embed_avg, decay=0.8, eps=1e-5,
        training=True, tile_m=256)
    jax.block_until_ready((q2, ind2, e2n, cs2, ea2))
    (q2_r, ind2_r), (e2_r, cs2_r, ea2_r) = _reference_forward(
        x_big, embed, cluster_size, embed_avg)
    assert jnp.array_equal(ind2.astype(jnp.int32), ind2_r.astype(jnp.int32))
    assert jnp.allclose(q2, q2_r, atol=1e-5, rtol=1e-5)
    assert jnp.allclose(cs2, cs2_r, atol=1e-4, rtol=1e-4)
    assert jnp.allclose(ea2, ea2_r, atol=1e-3, rtol=1e-3)
    assert jnp.allclose(e2n, e2_r, atol=1e-3, rtol=1e-3)

    print("KERNEL_OK")
</pallas_src>

<mosaic_0001>
module attributes {stable_mosaic.version = 11 : i64} {
  func.func @_codebook_kernel(%arg0: i32, %arg1: i32, %arg2: memref<128x32xf32, #tpu.memory_space<vmem>>, %arg3: memref<128x32xbf16, #tpu.memory_space<vmem>>, %arg4: memref<128x1xf32, #tpu.memory_space<vmem>>, %arg5: memref<1x1x128xi32, #tpu.memory_space<vmem>>, %arg6: memref<1x128x1xf32, #tpu.memory_space<vmem>>, %arg7: memref<1x128x32xf32, #tpu.memory_space<vmem>>) attributes {dimension_semantics = [#tpu.dimension_semantics<parallel>, #tpu.dimension_semantics<arbitrary>], iteration_bounds = array<i64: 1, 1>, scalar_prefetch = 0 : i64, scratch_operands = 0 : i64, tpu.core_type = #tpu.core_type<tc>, window_params = [{transform_indices = @transform_0, window_bounds = array<i64: 128, 32>}, {pipeline_mode = #tpu.pipeline_mode<synchronous>, transform_indices = @transform_1, window_bounds = array<i64: 128, 32>}, {pipeline_mode = #tpu.pipeline_mode<synchronous>, transform_indices = @transform_2, window_bounds = array<i64: 128, 1>}, {transform_indices = @transform_3, window_bounds = array<i64: 1, 1, 128>}, {transform_indices = @transform_4, window_bounds = array<i64: 1, 128, 1>}, {transform_indices = @transform_5, window_bounds = array<i64: 1, 128, 32>}]} {
    %c1_i32 = arith.constant 1 : i32
    %0 = arith.muli %arg0, %c1_i32 : i32
    %1 = arith.addi %0, %arg1 : i32
    %c0 = arith.constant 0 : index
    %c0_0 = arith.constant 0 : index
    %2 = vector.load %arg2[%c0, %c0_0] : memref<128x32xf32, #tpu.memory_space<vmem>>, vector<128x32xf32>
    %3 = arith.truncf %2 : vector<128x32xf32> to vector<128x32xbf16>
    %4 = tpu.iota {dimensions = array<i32: 0>} : vector<128x1xi32>
    %c128_i32 = arith.constant 128 : i32
    %5 = arith.muli %1, %c128_i32 : i32
    %6 = vector.broadcast %5 : i32 to vector<128x1xi32>
    %7 = arith.addi %6, %4 : vector<128x1xi32>
    %c16_i32 = arith.constant 16 : i32
    %8 = vector.broadcast %c16_i32 : i32 to vector<128x1xi32>
    %9 = arith.cmpi slt, %7, %8 : vector<128x1xi32>
    %cst = arith.constant 0.000000e+00 : bf16
    %10 = vector.broadcast %cst : bf16 to vector<128x32xbf16>
    %11 = vector.shape_cast %9 : vector<128x1xi1> to vector<128x1xi1>
    %12 = vector.broadcast %11 : vector<128x1xi1> to vector<128x32xi1>
    %13 = arith.select %12, %3, %10 : vector<128x32xi1>, vector<128x32xbf16>
    %c0_1 = arith.constant 0 : index
    %c0_2 = arith.constant 0 : index
    %14 = vector.load %arg3[%c0_1, %c0_2] : memref<128x32xbf16, #tpu.memory_space<vmem>>, vector<128x32xbf16>
    %cst_3 = arith.constant dense<0.000000e+00> : vector<128x128xf32>
    %15 = tpu.matmul %14, %13, %cst_3 {dimension_numbers = #tpu.dot_dimension_numbers<[1], [1], [0], [0], [0, 0, 1, 0], [], []>} : vector<128x32xbf16>, vector<128x32xbf16>, vector<128x128xf32> -> vector<128x128xf32>
    %c0_4 = arith.constant 0 : index
    %c0_5 = arith.constant 0 : index
    %16 = vector.load %arg4[%c0_4, %c0_5] : memref<128x1xf32, #tpu.memory_space<vmem>>, vector<128x1xf32>
    %17 = vector.broadcast %16 : vector<128x1xf32> to vector<128x128xf32>
    %18 = arith.subf %15, %17 : vector<128x128xf32>
    %19 = tpu.bitcast %18 : vector<128x128xf32> -> vector<128x128xi32>
    %c0_i32 = arith.constant 0 : i32
    %20 = vector.broadcast %c0_i32 : i32 to vector<128x128xi32>
    %21 = arith.cmpi slt, %19, %20 : vector<128x128xi32>
    %c2147483647_i32 = arith.constant 2147483647 : i32
    %22 = vector.broadcast %c2147483647_i32 : i32 to vector<128x128xi32>
    %23 = arith.xori %19, %22 : vector<128x128xi32>
    %24 = arith.select %21, %23, %19 : vector<128x128xi1>, vector<128x128xi32>
    %25 = tpu.iota {dimensions = array<i32: 0>} : vector<128x128xi32>
    %c127_i32 = arith.constant 127 : i32
    %c-1_i32 = arith.constant -1 : i32
    %26 = arith.xori %c127_i32, %c-1_i32 : i32
    %27 = vector.broadcast %26 : i32 to vector<128x128xi32>
    %28 = arith.andi %24, %27 : vector<128x128xi32>
    %c127_i32_6 = arith.constant 127 : i32
    %29 = vector.broadcast %c127_i32_6 : i32 to vector<128x128xi32>
    %30 = arith.subi %29, %25 : vector<128x128xi32>
    %31 = arith.ori %28, %30 : vector<128x128xi32>
    %cst_7 = arith.constant dense<-2147483648> : vector<128xi32>
    %32 = vector.multi_reduction <maxsi>, %31, %cst_7 [0] : vector<128x128xi32> to vector<128xi32>
    %33 = vector.shape_cast %32 : vector<128xi32> to vector<1x128xi32>
    %c127_i32_8 = arith.constant 127 : i32
    %34 = vector.broadcast %c127_i32_8 : i32 to vector<1x128xi32>
    %35 = arith.andi %33, %34 : vector<1x128xi32>
    %c127_i32_9 = arith.constant 127 : i32
    %36 = vector.broadcast %c127_i32_9 : i32 to vector<1x128xi32>
    %37 = arith.subi %36, %35 : vector<1x128xi32>
    %38 = vector.shape_cast %37 : vector<1x128xi32> to vector<1x1x128xi32>
    %c0_10 = arith.constant 0 : index
    %c0_11 = arith.constant 0 : index
    %c0_12 = arith.constant 0 : index
    %39 = vector.load %arg5[%c0_10, %c0_11, %c0_12] : memref<1x1x128xi32, #tpu.memory_space<vmem>>, vector<1x1x128xi32>
    tpu.vector_store %arg5[%c0_10, %c0_11, %c0_12], %38 {strides = array<i32>} : memref<1x1x128xi32, #tpu.memory_space<vmem>>, vector<1x1x128xi32>,
    %40 = tpu.iota {dimensions = array<i32: 1>} : vector<1x128xi32>
    %c128_i32_13 = arith.constant 128 : i32
    %41 = arith.muli %1, %c128_i32_13 : i32
    %42 = vector.broadcast %41 : i32 to vector<1x128xi32>
    %43 = arith.addi %42, %40 : vector<1x128xi32>
    %c16_i32_14 = arith.constant 16 : i32
    %44 = vector.broadcast %c16_i32_14 : i32 to vector<1x128xi32>
    %45 = arith.cmpi slt, %43, %44 : vector<1x128xi32>
    %c128_i32_15 = arith.constant 128 : i32
    %46 = vector.broadcast %c128_i32_15 : i32 to vector<1x128xi32>
    %47 = arith.select %45, %37, %46 : vector<1x128xi1>, vector<1x128xi32>
    %48 = tpu.iota {dimensions = array<i32: 0>} : vector<128x128xi32>
    %49 = vector.broadcast %47 : vector<1x128xi32> to vector<128x128xi32>
    %50 = arith.cmpi eq, %48, %49 : vector<128x128xi32>
    %c0_i32_16 = arith.constant 0 : i32
    %51 = arith.cmpi eq, %arg1, %c0_i32_16 : i32
    %52 = arith.extui %51 : i1 to i32
    %c0_i32_17 = arith.constant 0 : i32
    %53 = arith.cmpi ne, %52, %c0_i32_17 : i32
    scf.if %53 {
      %cst_32 = arith.constant 0.000000e+00 : f32
      %70 = vector.broadcast %cst_32 : f32 to vector<1x128x1xf32>
      %c0_33 = arith.constant 0 : index
      %c0_34 = arith.constant 0 : index
      %c0_35 = arith.constant 0 : index
      %71 = vector.load %arg6[%c0_33, %c0_34, %c0_35] : memref<1x128x1xf32, #tpu.memory_space<vmem>>, vector<1x128x1xf32>
      tpu.vector_store %arg6[%c0_33, %c0_34, %c0_35], %70 {strides = array<i32>} : memref<1x128x1xf32, #tpu.memory_space<vmem>>, vector<1x128x1xf32>,
      %cst_36 = arith.constant 0.000000e+00 : f32
      %72 = vector.broadcast %cst_36 : f32 to vector<1x128x32xf32>
      %c0_37 = arith.constant 0 : index
      %c0_38 = arith.constant 0 : index
      %c0_39 = arith.constant 0 : index
      %73 = vector.load %arg7[%c0_37, %c0_38, %c0_39] : memref<1x128x32xf32, #tpu.memory_space<vmem>>, vector<1x128x32xf32>
      tpu.vector_store %arg7[%c0_37, %c0_38, %c0_39], %72 {strides = array<i32>} : memref<1x128x32xf32, #tpu.memory_space<vmem>>, vector<1x128x32xf32>,
    } else {
    }
    %54 = arith.extui %50 : vector<128x128xi1> to vector<128x128xi32>
    %55 = arith.sitofp %54 : vector<128x128xi32> to vector<128x128xf32>
    %cst_18 = arith.constant dense<0.000000e+00> : vector<128xf32>
    %56 = vector.multi_reduction <add>, %55, %cst_18 [1] : vector<128x128xf32> to vector<128xf32>
    %57 = vector.shape_cast %56 : vector<128xf32> to vector<128x1xf32>
    %c0_19 = arith.constant 0 : index
    %c0_20 = arith.constant 0 : index
    %c0_21 = arith.constant 0 : index
    %58 = vector.load %arg6[%c0_19, %c0_20, %c0_21] : memref<1x128x1xf32, #tpu.memory_space<vmem>>, vector<1x128x1xf32>
    %59 = vector.shape_cast %57 : vector<128x1xf32> to vector<1x128x1xf32>
    %60 = arith.addf %58, %59 : vector<1x128x1xf32>
    %c0_22 = arith.constant 0 : index
    %c0_23 = arith.constant 0 : index
    %c0_24 = arith.constant 0 : index
    %61 = vector.load %arg6[%c0_22, %c0_23, %c0_24] : memref<1x128x1xf32, #tpu.memory_space<vmem>>, vector<1x128x1xf32>
    tpu.vector_store %arg6[%c0_22, %c0_23, %c0_24], %60 {strides = array<i32>} : memref<1x128x1xf32, #tpu.memory_space<vmem>>, vector<1x128x1xf32>,
    %62 = arith.extui %50 : vector<128x128xi1> to vector<128x128xi32>
    %63 = arith.sitofp %62 : vector<128x128xi32> to vector<128x128xf32>
    %64 = arith.truncf %63 : vector<128x128xf32> to vector<128x128xbf16>
    %cst_25 = arith.constant dense<0.000000e+00> : vector<128x32xf32>
    %65 = tpu.matmul %64, %13, %cst_25 {dimension_numbers = #tpu.dot_dimension_numbers<[1], [0], [0], [1], [0, 0, 1, 1], [], []>} : vector<128x128xbf16>, vector<128x32xbf16>, vector<128x32xf32> -> vector<128x32xf32>
    %c0_26 = arith.constant 0 : index
    %c0_27 = arith.constant 0 : index
    %c0_28 = arith.constant 0 : index
    %66 = vector.load %arg7[%c0_26, %c0_27, %c0_28] : memref<1x128x32xf32, #tpu.memory_space<vmem>>, vector<1x128x32xf32>
    %67 = vector.shape_cast %65 : vector<128x32xf32> to vector<1x128x32xf32>
    %68 = arith.addf %66, %67 : vector<1x128x32xf32>
    %c0_29 = arith.constant 0 : index
    %c0_30 = arith.constant 0 : index
    %c0_31 = arith.constant 0 : index
    %69 = vector.load %arg7[%c0_29, %c0_30, %c0_31] : memref<1x128x32xf32, #tpu.memory_space<vmem>>, vector<1x128x32xf32>
    tpu.vector_store %arg7[%c0_29, %c0_30, %c0_31], %68 {strides = array<i32>} : memref<1x128x32xf32, #tpu.memory_space<vmem>>, vector<1x128x32xf32>,
    return
  }
  func.func @transform_0(%arg0: i32, %arg1: i32) -> (i32, i32) {
    %c1_i32 = arith.constant 1 : i32
    %0 = arith.muli %arg0, %c1_i32 : i32
    %1 = arith.addi %0, %arg1 : i32
    %c0_i32 = arith.constant 0 : i32
    %2 = arith.minsi %1, %c0_i32 : i32
    %c0_i32_0 = arith.constant 0 : i32
    %c0_i32_1 = arith.constant 0 : i32
    return %2, %c0_i32_0 : i32, i32
  }
  func.func @transform_1(%arg0: i32, %arg1: i32) -> (i32, i32) {
    %c0_i32 = arith.constant 0 : i32
    %c0_i32_0 = arith.constant 0 : i32
    %c0_i32_1 = arith.constant 0 : i32
    return %c0_i32, %c0_i32_0 : i32, i32
  }
  func.func @transform_2(%arg0: i32, %arg1: i32) -> (i32, i32) {
    %c0_i32 = arith.constant 0 : i32
    %c0_i32_0 = arith.constant 0 : i32
    %c0_i32_1 = arith.constant 0 : i32
    return %c0_i32, %c0_i32_0 : i32, i32
  }
  func.func @transform_3(%arg0: i32, %arg1: i32) -> (i32, i32, i32) {
    %c1_i32 = arith.constant 1 : i32
    %0 = arith.muli %arg0, %c1_i32 : i32
    %1 = arith.addi %0, %arg1 : i32
    %c0_i32 = arith.constant 0 : i32
    %c0_i32_0 = arith.constant 0 : i32
    %c0_i32_1 = arith.constant 0 : i32
    return %1, %c0_i32, %c0_i32_0 : i32, i32, i32
  }
  func.func @transform_4(%arg0: i32, %arg1: i32) -> (i32, i32, i32) {
    %c0_i32 = arith.constant 0 : i32
    %c0_i32_0 = arith.constant 0 : i32
    %c0_i32_1 = arith.constant 0 : i32
    return %arg0, %c0_i32, %c0_i32_0 : i32, i32, i32
  }
  func.func @transform_5(%arg0: i32, %arg1: i32) -> (i32, i32, i32) {
    %c0_i32 = arith.constant 0 : i32
    %c0_i32_0 = arith.constant 0 : i32
    %c0_i32_1 = arith.constant 0 : i32
    return %arg0, %c0_i32, %c0_i32_0 : i32, i32, i32
  }
}

</mosaic_0001>

<llo_original>
// kernel: euclidean_codebook_forward.1
$region0: #{euclidean_codebook_forward.1}
  #allocation0 [shape = 'u32[]', space=smem, size = 0x4, offset = 0x4, fixed_abs, tag = 'smem constant byte address 0x4 - core index']
  #allocation1 [shape = 'u32[72,128]{1,0:T(1,128)}', space=vmem, size = 0x9000, scoped, tag = 'internal scratch']
  %s0 = inlined_call_operand.vmem [shape: f32[16,32], index: 0, kind: input, shape index: {}]
  %s1 = inlined_call_operand.vmem [shape: bf16[128,32], index: 1, kind: input, shape index: {}]
  %s2 = inlined_call_operand.vmem [shape: f32[128,1], index: 2, kind: input, shape index: {}]
  %s3 = inlined_call_operand.vmem [shape: s32[1,1,128], index: 3, kind: output, shape index: {0}]
  %s4 = inlined_call_operand.vmem [shape: f32[1,128,1], index: 4, kind: output, shape index: {1}]
  %s5 = inlined_call_operand.vmem [shape: f32[1,128,32], index: 5, kind: output, shape index: {2}]
  %6 = xla_tuple %s3, %s4, %s5
  %s7 = sld [smem:[#allocation0]]
  $region42: #{euclidean_codebook_forward.1} parent=0
    _
  %s9 = ssub.s32 1, %s7
  %s10 = scalar_select 0, %s9, %s7
  // Predicated region
  $region2: #{euclidean_codebook_forward.1} parent=0 // pred_check
    _
  $region3: #{euclidean_codebook_forward.1} parent=0 // pred_check_branch
    %12 = sbr.rel (0) target = $region5
  $region4: #{euclidean_codebook_forward.1} parent=0 // pred_region
    %s13 = sadd.s32 0, 0
    %p14 = scmp.lt.s32.totalorder %s13, 0
    %s15 = scalar_select %p14, %s13, 0
    %s16 = smul.u32 16, %s15
    %s17 = ssub.s32 2, %s16
    %s18 = smul.u32 8, %s17
    %p19 = scmp.lt.s32.totalorder %s16, 1
    %s20 = scalar_select %p19, %s16, 1
    %s21 = smul.addr %s20, 8
    %s22 = scalar_lea.vmem %s0, %s21
    %s23 = sadd.s32 0, 0
    %p24 = scmp.lt.s32.totalorder %s23, 0
    %s25 = scalar_select %p24, %s23, 0
    %s26 = smul.u32 16, %s25
    %s27 = ssub.s32 2, %s26
    %s28 = smul.u32 8, %s27
  $region5: #{euclidean_codebook_forward.1} parent=0 // pred_fallthru
    _
  // Predicated region
  $region6: #{euclidean_codebook_forward.1} parent=0 // pred_check
    _
  $region7: #{euclidean_codebook_forward.1} parent=0 // pred_check_branch
    %30 = sbr.rel (0) target = $region9
  $region8: #{euclidean_codebook_forward.1} parent=0 // pred_region
    _
  $region9: #{euclidean_codebook_forward.1} parent=0 // pred_fallthru
    _
  // Predicated region
  $region10: #{euclidean_codebook_forward.1} parent=0 // pred_check
    _
  $region11: #{euclidean_codebook_forward.1} parent=0 // pred_check_branch
    %32 = sbr.rel (0) target = $region13
  $region12: #{euclidean_codebook_forward.1} parent=0 // pred_region
    _
  $region13: #{euclidean_codebook_forward.1} parent=0 // pred_fallthru
    _
  %s33 = sadd.s32 0, 0
  %p34 = scmp.lt.s32.totalorder %s33, 0
  %s35 = scalar_select %p34, %s33, 0
  %s36 = smul.u32 16, %s35
  %s37 = ssub.s32 2, %s36
  %s38 = smul.u32 8, %s37
  %p39 = scmp.lt.s32.totalorder %s36, 1
  %s40 = scalar_select %p39, %s36, 1
  %s41 = smul.addr %s40, 8
  %s42 = scalar_lea.vmem %s0, %s41
  %s43 = sadd.s32 0, 0
  %p44 = scmp.lt.s32.totalorder %s43, 0
  %s45 = scalar_select %p44, %s43, 0
  %s46 = scalar_lea.vmem %s3, %s45
  %s47 = sadd.s32 0, 0
  %p48 = scmp.lt.s32.totalorder %s47, 0
  %s49 = scalar_select %p48, %s47, 0
  %s50 = smul.u32 16, %s49
  %s51 = ssub.s32 2, %s50
  %s52 = smul.u32 8, %s51
  %p53 = scmp.lt.s32.totalorder %s50, 1
  %s54 = scalar_select %p53, %s50, 1
  %s55 = smul.addr %s54, 8
  %s56 = scalar_lea.vmem %s0, %s55
  %s57 = sadd.s32 0, 0
  %p58 = scmp.lt.s32.totalorder %s57, 0
  %s59 = scalar_select %p58, %s57, 0
  %s60 = smul.u32 16, %s59
  %s61 = ssub.s32 2, %s60
  %s62 = smul.u32 8, %s61
  %s63 = sadd.s32 0, 0
  %p64 = scmp.lt.s32.totalorder %s63, 0
  %s65 = scalar_select %p64, %s63, 0
  %s66 = scalar_lea.vmem %s3, %s65
  %s67 = sadd.s32 0, 0
  %s69 = sadd.s32 0, 0
  %v70 = vld [vmem:[%s56] sm:$0xff]
  %v71 = vld [vmem:[%s56 + $0x8] sm:$0xff]
  %v72 = vld [vmem:[%s56 + $0x10] sm:$0xff]
  %v73 = vld [vmem:[%s56 + $0x18] sm:$0xff]
  %v74 = vld [vmem:[%s56 + $0x20] sm:$0xff]
  %v75 = vld [vmem:[%s56 + $0x28] sm:$0xff]
  %v76 = vld [vmem:[%s56 + $0x30] sm:$0xff]
  %v77 = vld [vmem:[%s56 + $0x38] sm:$0xff]
  %v78 = vld [vmem:[%s56 + $0x40] sm:$0xff]
  %v79 = vld [vmem:[%s56 + $0x48] sm:$0xff]
  %v80 = vld [vmem:[%s56 + $0x50] sm:$0xff]
  %v81 = vld [vmem:[%s56 + $0x58] sm:$0xff]
  %v82 = vld [vmem:[%s56 + $0x60] sm:$0xff]
  %v83 = vld [vmem:[%s56 + $0x68] sm:$0xff]
  %v84 = vld [vmem:[%s56 + $0x70] sm:$0xff]
  %v85 = vld [vmem:[%s56 + $0x78] sm:$0xff]
  %v86 = vpack.c.bf16 %v70, %v70
  %v87 = vpack.c.bf16 %v71, %v71
  %v88 = vpack.c.bf16 %v72, %v72
  %v89 = vpack.c.bf16 %v73, %v73
  %v90 = vpack.c.bf16 %v74, %v74
  %v91 = vpack.c.bf16 %v75, %v75
  %v92 = vpack.c.bf16 %v76, %v76
  %v93 = vpack.c.bf16 %v77, %v77
  %v94 = vpack.c.bf16 %v78, %v78
  %v95 = vpack.c.bf16 %v79, %v79
  %v96 = vpack.c.bf16 %v80, %v80
  %v97 = vpack.c.bf16 %v81, %v81
  %v98 = vpack.c.bf16 %v82, %v82
  %v99 = vpack.c.bf16 %v83, %v83
  %v100 = vpack.c.bf16 %v84, %v84
  %v101 = vpack.c.bf16 %v85, %v85
  %v102 = vlaneseq
  %v103 = vshrl.u32 %v102, 7
  %v104 = vadd.s32 %v103, 8
  %v105 = vadd.s32 %v103, 16
  %v106 = vadd.s32 %v103, 24
  %v107 = vadd.s32 %v103, 32
  %v108 = vadd.s32 %v103, 40
  %v109 = vadd.s32 %v103, 48
  %v110 = vadd.s32 %v103, 56
  %v111 = vadd.s32 %v103, 64
  %v112 = vadd.s32 %v103, 72
  %v113 = vadd.s32 %v103, 80
  %v114 = vadd.s32 %v103, 88
  %v115 = vadd.s32 %v103, 96
  %v116 = vadd.s32 %v103, 104
  %v117 = vadd.s32 %v103, 112
  %v118 = vadd.s32 %v103, 120
  %s119 = smul.u32 %s69, 128
  %v120 = vstv %s119
  %v121 = vadd.s32 %v120, %v103
  %v122 = vadd.s32 %v120, %v104
  %v123 = vadd.s32 %v120, %v105
  %v124 = vadd.s32 %v120, %v106
  %v125 = vadd.s32 %v120, %v107
  %v126 = vadd.s32 %v120, %v108
  %v127 = vadd.s32 %v120, %v109
  %v128 = vadd.s32 %v120, %v110
  %v129 = vadd.s32 %v120, %v111
  %v130 = vadd.s32 %v120, %v112
  %v131 = vadd.s32 %v120, %v113
  %v132 = vadd.s32 %v120, %v114
  %v133 = vadd.s32 %v120, %v115
  %v134 = vadd.s32 %v120, %v116
  %v135 = vadd.s32 %v120, %v117
  %v136 = vadd.s32 %v120, %v118
  %vm137 = vcmp.lt.s32.totalorder %v121, 16
  %vm138 = vcmp.lt.s32.totalorder %v122, 16
  %vm139 = vcmp.lt.s32.totalorder %v123, 16
  %vm140 = vcmp.lt.s32.totalorder %v124, 16
  %vm141 = vcmp.lt.s32.totalorder %v125, 16
  %vm142 = vcmp.lt.s32.totalorder %v126, 16
  %vm143 = vcmp.lt.s32.totalorder %v127, 16
  %vm144 = vcmp.lt.s32.totalorder %v128, 16
  %vm145 = vcmp.lt.s32.totalorder %v129, 16
  %vm146 = vcmp.lt.s32.totalorder %v130, 16
  %vm147 = vcmp.lt.s32.totalorder %v131, 16
  %vm148 = vcmp.lt.s32.totalorder %v132, 16
  %vm149 = vcmp.lt.s32.totalorder %v133, 16
  %vm150 = vcmp.lt.s32.totalorder %v134, 16
  %vm151 = vcmp.lt.s32.totalorder %v135, 16
  %vm152 = vcmp.lt.s32.totalorder %v136, 16
  %v153 = vsel %vm137, 1, 0
  %v154 = vsel %vm138, 1, 0
  %v155 = vsel %vm139, 1, 0
  %v156 = vsel %vm140, 1, 0
  %v157 = vsel %vm141, 1, 0
  %v158 = vsel %vm142, 1, 0
  %v159 = vsel %vm143, 1, 0
  %v160 = vsel %vm144, 1, 0
  %v161 = vsel %vm145, 1, 0
  %v162 = vsel %vm146, 1, 0
  %v163 = vsel %vm147, 1, 0
  %v164 = vsel %vm148, 1, 0
  %v165 = vsel %vm149, 1, 0
  %v166 = vsel %vm150, 1, 0
  %v167 = vsel %vm151, 1, 0
  %v168 = vsel %vm152, 1, 0
  %vm169 = vcmp.eq.s32.totalorder %v153, 1
  %vm170 = vcmp.eq.s32.totalorder %v154, 1
  %vm171 = vcmp.eq.s32.totalorder %v155, 1
  %vm172 = vcmp.eq.s32.totalorder %v156, 1
  %vm173 = vcmp.eq.s32.totalorder %v157, 1
  %vm174 = vcmp.eq.s32.totalorder %v158, 1
  %vm175 = vcmp.eq.s32.totalorder %v159, 1
  %vm176 = vcmp.eq.s32.totalorder %v160, 1
  %vm177 = vcmp.eq.s32.totalorder %v161, 1
  %vm178 = vcmp.eq.s32.totalorder %v162, 1
  %vm179 = vcmp.eq.s32.totalorder %v163, 1
  %vm180 = vcmp.eq.s32.totalorder %v164, 1
  %vm181 = vcmp.eq.s32.totalorder %v165, 1
  %vm182 = vcmp.eq.s32.totalorder %v166, 1
  %vm183 = vcmp.eq.s32.totalorder %v167, 1
  %vm184 = vcmp.eq.s32.totalorder %v168, 1
  %vm185 = vmpackc.low %vm169, %vm169
  %vm186 = vmpackc.low %vm170, %vm170
  %vm187 = vmpackc.low %vm171, %vm171
  %vm188 = vmpackc.low %vm172, %vm172
  %vm189 = vmpackc.low %vm173, %vm173
  %vm190 = vmpackc.low %vm174, %vm174
  %vm191 = vmpackc.low %vm175, %vm175
  %vm192 = vmpackc.low %vm176, %vm176
  %vm193 = vmpackc.low %vm177, %vm177
  %vm194 = vmpackc.low %vm178, %vm178
  %vm195 = vmpackc.low %vm179, %vm179
  %vm196 = vmpackc.low %vm180, %vm180
  %vm197 = vmpackc.low %vm181, %vm181
  %vm198 = vmpackc.low %vm182, %vm182
  %vm199 = vmpackc.low %vm183, %vm183
  %vm200 = vmpackc.low %vm184, %vm184
  %v201 = vsel %vm185, %v86, 0
  %v202 = vsel %vm186, %v87, 0
  %v203 = vsel %vm187, %v88, 0
  %v204 = vsel %vm188, %v89, 0
  %v205 = vsel %vm189, %v90, 0
  %v206 = vsel %vm190, %v91, 0
  %v207 = vsel %vm191, %v92, 0
  %v208 = vsel %vm192, %v93, 0
  %v209 = vsel %vm193, %v94, 0
  %v210 = vsel %vm194, %v95, 0
  %v211 = vsel %vm195, %v96, 0
  %v212 = vsel %vm196, %v97, 0
  %v213 = vsel %vm197, %v98, 0
  %v214 = vsel %vm198, %v99, 0
  %v215 = vsel %vm199, %v100, 0
  %v216 = vsel %vm200, %v101, 0
  %v217 = vld [vmem:[%s1] sm:$0xf]
  %v218 = vld [vmem:[%s1 + $0x4] sm:$0xf]
  %v219 = vld [vmem:[%s1 + $0x8] sm:$0xf]
  %v220 = vld [vmem:[%s1 + $0xc] sm:$0xf]
  %v221 = vld [vmem:[%s1 + $0x10] sm:$0xf]
  %v222 = vld [vmem:[%s1 + $0x14] sm:$0xf]
  %v223 = vld [vmem:[%s1 + $0x18] sm:$0xf]
  %v224 = vld [vmem:[%s1 + $0x1c] sm:$0xf]
  %v225 = vld [vmem:[%s1 + $0x20] sm:$0xf]
  %v226 = vld [vmem:[%s1 + $0x24] sm:$0xf]
  %v227 = vld [vmem:[%s1 + $0x28] sm:$0xf]
  %v228 = vld [vmem:[%s1 + $0x2c] sm:$0xf]
  %v229 = vld [vmem:[%s1 + $0x30] sm:$0xf]
  %v230 = vld [vmem:[%s1 + $0x34] sm:$0xf]
  %v231 = vld [vmem:[%s1 + $0x38] sm:$0xf]
  %v232 = vld [vmem:[%s1 + $0x3c] sm:$0xf]
  %v249 = vunpack.c.l.b16 %v217
  %v250 = vunpack.c.l.b16 %v218
  %v251 = vunpack.c.l.b16 %v219
  %v252 = vunpack.c.l.b16 %v220
  %v253 = vunpack.c.l.b16 %v221
  %v254 = vunpack.c.l.b16 %v222
  %v255 = vunpack.c.l.b16 %v223
  %v256 = vunpack.c.l.b16 %v224
  %v257 = vunpack.c.l.b16 %v225
  %v258 = vunpack.c.l.b16 %v226
  %v259 = vunpack.c.l.b16 %v227
  %v260 = vunpack.c.l.b16 %v228
  %v261 = vunpack.c.l.b16 %v229
  %v262 = vunpack.c.l.b16 %v230
  %v263 = vunpack.c.l.b16 %v231
  %v264 = vunpack.c.l.b16 %v232
  %v265 = vpack.c.b16 %v250, %v249
  %v266 = vpack.c.b16 %v252, %v251
  %v267 = vpack.c.b16 %v254, %v253
  %v268 = vpack.c.b16 %v256, %v255
  %v269 = vpack.c.b16 %v258, %v257
  %v270 = vpack.c.b16 %v260, %v259
  %v271 = vpack.c.b16 %v262, %v261
  %v272 = vpack.c.b16 %v264, %v263
  %v289 = vunpack.c.l.b16 %v201
  %v290 = vunpack.c.l.b16 %v202
  %v291 = vunpack.c.l.b16 %v203
  %v292 = vunpack.c.l.b16 %v204
  %v293 = vunpack.c.l.b16 %v205
  %v294 = vunpack.c.l.b16 %v206
  %v295 = vunpack.c.l.b16 %v207
  %v296 = vunpack.c.l.b16 %v208
  %v297 = vunpack.c.l.b16 %v209
  %v298 = vunpack.c.l.b16 %v210
  %v299 = vunpack.c.l.b16 %v211
  %v300 = vunpack.c.l.b16 %v212
  %v301 = vunpack.c.l.b16 %v213
  %v302 = vunpack.c.l.b16 %v214
  %v303 = vunpack.c.l.b16 %v215
  %v304 = vunpack.c.l.b16 %v216
  %v305 = vpack.c.b16 %v290, %v289
  %v306 = vpack.c.b16 %v292, %v291
  %v307 = vpack.c.b16 %v294, %v293
  %v308 = vpack.c.b16 %v296, %v295
  %v309 = vpack.c.b16 %v298, %v297
  %v310 = vpack.c.b16 %v300, %v299
  %v311 = vpack.c.b16 %v302, %v301
  %v312 = vpack.c.b16 %v304, %v303
  %vm313 = vcmask 261120
  %v315 = vsel %vm313, %v265, 0
  %v318 = vsel %vm313, %v266, 0
  %v321 = vsel %vm313, %v267, 0
  %v324 = vsel %vm313, %v268, 0
  %v327 = vsel %vm313, %v269, 0
  %v330 = vsel %vm313, %v270, 0
  %v333 = vsel %vm313, %v271, 0
  %v336 = vsel %vm313, %v272, 0
  %v339 = vsel %vm313, %v305, 0
  %v342 = vsel %vm313, %v306, 0
  %v345 = vsel %vm313, %v307, 0
  %v348 = vsel %vm313, %v308, 0
  %v351 = vsel %vm313, %v309, 0
  %v354 = vsel %vm313, %v310, 0
  %v357 = vsel %vm313, %v311, 0
  %v360 = vsel %vm313, %v312, 0
  %362 = vmatpush.bf16.xpose.msra.mxu0 %v360
  %363 = vmatpush.bf16.xpose.msra.mxu0 %v357
  %364 = vmatpush.bf16.xpose.msra.mxu0 %v354
  %365 = vmatpush.bf16.xpose.msra.mxu0 %v351
  %366 = vmatpush.bf16.xpose.msra.mxu0 %v348
  %367 = vmatpush.bf16.xpose.msra.mxu0 %v345
  %368 = vmatpush.bf16.xpose.msra.mxu0 %v342
  %369 = vmatpush.bf16.xpose.msra.mxu0 %v339
  %370 = vmatmul.bf16.gmra.mxu0 %v315
  %v371 = vpop.f32.mrf.mxu0
  %v372 = vadd.f32 0.0, %v371
  %v373 = vpop.f32.mrf.mxu0
  %v374 = vadd.f32 0.0, %v373
  %375 = vmatmul.bf16.gmra.mxu0 %v318
  %v376 = vpop.f32.mrf.mxu0
  %v377 = vadd.f32 0.0, %v376
  %v378 = vpop.f32.mrf.mxu0
  %v379 = vadd.f32 0.0, %v378
  %380 = vmatmul.bf16.gmra.mxu0 %v321
  %v381 = vpop.f32.mrf.mxu0
  %v382 = vadd.f32 0.0, %v381
  %v383 = vpop.f32.mrf.mxu0
  %v384 = vadd.f32 0.0, %v383
  %385 = vmatmul.bf16.gmra.mxu0 %v324
  %v386 = vpop.f32.mrf.mxu0
  %v387 = vadd.f32 0.0, %v386
  %v388 = vpop.f32.mrf.mxu0
  %v389 = vadd.f32 0.0, %v388
  %390 = vmatmul.bf16.gmra.mxu0 %v327
  %v391 = vpop.f32.mrf.mxu0
  %v392 = vadd.f32 0.0, %v391
  %v393 = vpop.f32.mrf.mxu0
  %v394 = vadd.f32 0.0, %v393
  %395 = vmatmul.bf16.gmra.mxu0 %v330
  %v396 = vpop.f32.mrf.mxu0
  %v397 = vadd.f32 0.0, %v396
  %v398 = vpop.f32.mrf.mxu0
  %v399 = vadd.f32 0.0, %v398
  %400 = vmatmul.bf16.gmra.mxu0 %v333
  %v401 = vpop.f32.mrf.mxu0
  %v402 = vadd.f32 0.0, %v401
  %v403 = vpop.f32.mrf.mxu0
  %v404 = vadd.f32 0.0, %v403
  %405 = vmatmul.bf16.gmra.mxu0 %v336
  %v406 = vpop.f32.mrf.mxu0
  %v407 = vadd.f32 0.0, %v406
  %v408 = vpop.f32.mrf.mxu0
  %v409 = vadd.f32 0.0, %v408
  %410 = vdwg.mxu0
  %v411 = vld [vmem:[%s2] sm:$0xff]
  %v412 = vld [vmem:[%s2 + $0x8] sm:$0xff]
  %v413 = vld [vmem:[%s2 + $0x10] sm:$0xff]
  %v414 = vld [vmem:[%s2 + $0x18] sm:$0xff]
  %v415 = vld [vmem:[%s2 + $0x20] sm:$0xff]
  %v416 = vld [vmem:[%s2 + $0x28] sm:$0xff]
  %v417 = vld [vmem:[%s2 + $0x30] sm:$0xff]
  %v418 = vld [vmem:[%s2 + $0x38] sm:$0xff]
  %v419 = vld [vmem:[%s2 + $0x40] sm:$0xff]
  %v420 = vld [vmem:[%s2 + $0x48] sm:$0xff]
  %v421 = vld [vmem:[%s2 + $0x50] sm:$0xff]
  %v422 = vld [vmem:[%s2 + $0x58] sm:$0xff]
  %v423 = vld [vmem:[%s2 + $0x60] sm:$0xff]
  %v424 = vld [vmem:[%s2 + $0x68] sm:$0xff]
  %v425 = vld [vmem:[%s2 + $0x70] sm:$0xff]
  %v426 = vld [vmem:[%s2 + $0x78] sm:$0xff]
  %428 = vset.pattern.permute.xlu0 0
  %429 = vperm.xlu0 %428, %v411
  %v430 = vpop.permute.xlu0 %429
  %433 = vset.pattern.permute.xlu0 0
  %434 = vperm.xlu0 %433, %v412
  %v435 = vpop.permute.xlu0 %434
  %438 = vset.pattern.permute.xlu0 0
  %439 = vperm.xlu0 %438, %v413
  %v440 = vpop.permute.xlu0 %439
  %443 = vset.pattern.permute.xlu0 0
  %444 = vperm.xlu0 %443, %v414
  %v445 = vpop.permute.xlu0 %444
  %448 = vset.pattern.permute.xlu0 0
  %449 = vperm.xlu0 %448, %v415
  %v450 = vpop.permute.xlu0 %449
  %453 = vset.pattern.permute.xlu0 0
  %454 = vperm.xlu0 %453, %v416
  %v455 = vpop.permute.xlu0 %454
  %458 = vset.pattern.permute.xlu0 0
  %459 = vperm.xlu0 %458, %v417
  %v460 = vpop.permute.xlu0 %459
  %463 = vset.pattern.permute.xlu0 0
  %464 = vperm.xlu0 %463, %v418
  %v465 = vpop.permute.xlu0 %464
  %468 = vset.pattern.permute.xlu0 0
  %469 = vperm.xlu0 %468, %v419
  %v470 = vpop.permute.xlu0 %469
  %473 = vset.pattern.permute.xlu0 0
  %474 = vperm.xlu0 %473, %v420
  %v475 = vpop.permute.xlu0 %474
  %478 = vset.pattern.permute.xlu0 0
  %479 = vperm.xlu0 %478, %v421
  %v480 = vpop.permute.xlu0 %479
  %483 = vset.pattern.permute.xlu0 0
  %484 = vperm.xlu0 %483, %v422
  %v485 = vpop.permute.xlu0 %484
  %488 = vset.pattern.permute.xlu0 0
  %489 = vperm.xlu0 %488, %v423
  %v490 = vpop.permute.xlu0 %489
  %493 = vset.pattern.permute.xlu0 0
  %494 = vperm.xlu0 %493, %v424
  %v495 = vpop.permute.xlu0 %494
  %498 = vset.pattern.permute.xlu0 0
  %499 = vperm.xlu0 %498, %v425
  %v500 = vpop.permute.xlu0 %499
  %503 = vset.pattern.permute.xlu0 0
  %504 = vperm.xlu0 %503, %v426
  %v505 = vpop.permute.xlu0 %504
  %v507 = vsub.f32 %v372, %v430
  %v508 = vsub.f32 %v374, %v435
  %v509 = vsub.f32 %v377, %v440
  %v510 = vsub.f32 %v379, %v445
  %v511 = vsub.f32 %v382, %v450
  %v512 = vsub.f32 %v384, %v455
  %v513 = vsub.f32 %v387, %v460
  %v514 = vsub.f32 %v389, %v465
  %v515 = vsub.f32 %v392, %v470
  %v516 = vsub.f32 %v394, %v475
  %v517 = vsub.f32 %v397, %v480
  %v518 = vsub.f32 %v399, %v485
  %v519 = vsub.f32 %v402, %v490
  %v520 = vsub.f32 %v404, %v495
  %v521 = vsub.f32 %v407, %v500
  %v522 = vsub.f32 %v409, %v505
  %vm539 = vcmp.lt.s32.totalorder %v507, 0
  %vm540 = vcmp.lt.s32.totalorder %v508, 0
  %vm541 = vcmp.lt.s32.totalorder %v509, 0
  %vm542 = vcmp.lt.s32.totalorder %v510, 0
  %vm543 = vcmp.lt.s32.totalorder %v511, 0
  %vm544 = vcmp.lt.s32.totalorder %v512, 0
  %vm545 = vcmp.lt.s32.totalorder %v513, 0
  %vm546 = vcmp.lt.s32.totalorder %v514, 0
  %vm547 = vcmp.lt.s32.totalorder %v515, 0
  %vm548 = vcmp.lt.s32.totalorder %v516, 0
  %vm549 = vcmp.lt.s32.totalorder %v517, 0
  %vm550 = vcmp.lt.s32.totalorder %v518, 0
  %vm551 = vcmp.lt.s32.totalorder %v519, 0
  %vm552 = vcmp.lt.s32.totalorder %v520, 0
  %vm553 = vcmp.lt.s32.totalorder %v521, 0
  %vm554 = vcmp.lt.s32.totalorder %v522, 0
  %v555 = vxor.u32 %v507, 2147483647
  %v556 = vxor.u32 %v508, 2147483647
  %v557 = vxor.u32 %v509, 2147483647
  %v558 = vxor.u32 %v510, 2147483647
  %v559 = vxor.u32 %v511, 2147483647
  %v560 = vxor.u32 %v512, 2147483647
  %v561 = vxor.u32 %v513, 2147483647
  %v562 = vxor.u32 %v514, 2147483647
  %v563 = vxor.u32 %v515, 2147483647
  %v564 = vxor.u32 %v516, 2147483647
  %v565 = vxor.u32 %v517, 2147483647
  %v566 = vxor.u32 %v518, 2147483647
  %v567 = vxor.u32 %v519, 2147483647
  %v568 = vxor.u32 %v520, 2147483647
  %v569 = vxor.u32 %v521, 2147483647
  %v570 = vxor.u32 %v522, 2147483647
  %v571 = vsel %vm539, %v555, %v507
  %v572 = vsel %vm540, %v556, %v508
  %v573 = vsel %vm541, %v557, %v509
  %v574 = vsel %vm542, %v558, %v510
  %v575 = vsel %vm543, %v559, %v511
  %v576 = vsel %vm544, %v560, %v512
  %v577 = vsel %vm545, %v561, %v513
  %v578 = vsel %vm546, %v562, %v514
  %v579 = vsel %vm547, %v563, %v515
  %v580 = vsel %vm548, %v564, %v516
  %v581 = vsel %vm549, %v565, %v517
  %v582 = vsel %vm550, %v566, %v518
  %v583 = vsel %vm551, %v567, %v519
  %v584 = vsel %vm552, %v568, %v520
  %v585 = vsel %vm553, %v569, %v521
  %v586 = vsel %vm554, %v570, %v522
  %v587 = vand.u32 %v571, 4294967168
  %v588 = vand.u32 %v572, 4294967168
  %v589 = vand.u32 %v573, 4294967168
  %v590 = vand.u32 %v574, 4294967168
  %v591 = vand.u32 %v575, 4294967168
  %v592 = vand.u32 %v576, 4294967168
  %v593 = vand.u32 %v577, 4294967168
  %v594 = vand.u32 %v578, 4294967168
  %v595 = vand.u32 %v579, 4294967168
  %v596 = vand.u32 %v580, 4294967168
  %v597 = vand.u32 %v581, 4294967168
  %v598 = vand.u32 %v582, 4294967168
  %v599 = vand.u32 %v583, 4294967168
  %v600 = vand.u32 %v584, 4294967168
  %v601 = vand.u32 %v585, 4294967168
  %v602 = vand.u32 %v586, 4294967168
  %v603 = vsub.s32 127, %v103
  %v604 = vsub.s32 127, %v104
  %v605 = vsub.s32 127, %v105
  %v606 = vsub.s32 127, %v106
  %v607 = vsub.s32 127, %v107
  %v608 = vsub.s32 127, %v108
  %v609 = vsub.s32 127, %v109
  %v610 = vsub.s32 127, %v110
  %v611 = vsub.s32 127, %v111
  %v612 = vsub.s32 127, %v112
  %v613 = vsub.s32 127, %v113
  %v614 = vsub.s32 127, %v114
  %v615 = vsub.s32 127, %v115
  %v616 = vsub.s32 127, %v116
  %v617 = vsub.s32 127, %v117
  %v618 = vsub.s32 127, %v118
  %v619 = vor.u32 %v587, %v603
  %v620 = vor.u32 %v588, %v604
  %v621 = vor.u32 %v589, %v605
  %v622 = vor.u32 %v590, %v606
  %v623 = vor.u32 %v591, %v607
  %v624 = vor.u32 %v592, %v608
  %v625 = vor.u32 %v593, %v609
  %v626 = vor.u32 %v594, %v610
  %v627 = vor.u32 %v595, %v611
  %v628 = vor.u32 %v596, %v612
  %v629 = vor.u32 %v597, %v613
  %v630 = vor.u32 %v598, %v614
  %v631 = vor.u32 %v599, %v615
  %v632 = vor.u32 %v600, %v616
  %v633 = vor.u32 %v601, %v617
  %v634 = vor.u32 %v602, %v618
  %vm635 = vcmp.gt.s32.totalorder %v619, %v623
  %v636 = vsel %vm635, %v619, %v623
  %vm637 = vcmp.gt.s32.totalorder %v620, %v624
  %v638 = vsel %vm637, %v620, %v624
  %vm639 = vcmp.gt.s32.totalorder %v621, %v625
  %v640 = vsel %vm639, %v621, %v625
  %vm641 = vcmp.gt.s32.totalorder %v622, %v626
  %v642 = vsel %vm641, %v622, %v626
  %vm643 = vcmp.gt.s32.totalorder %v636, %v627
  %v644 = vsel %vm643, %v636, %v627
  %vm645 = vcmp.gt.s32.totalorder %v638, %v628
  %v646 = vsel %vm645, %v638, %v628
  %vm647 = vcmp.gt.s32.totalorder %v640, %v629
  %v648 = vsel %vm647, %v640, %v629
  %vm649 = vcmp.gt.s32.totalorder %v642, %v630
  %v650 = vsel %vm649, %v642, %v630
  %vm651 = vcmp.gt.s32.totalorder %v644, %v631
  %v652 = vsel %vm651, %v644, %v631
  %vm653 = vcmp.gt.s32.totalorder %v646, %v632
  %v654 = vsel %vm653, %v646, %v632
  %vm655 = vcmp.gt.s32.totalorder %v648, %v633
  %v656 = vsel %vm655, %v648, %v633
  %vm657 = vcmp.gt.s32.totalorder %v650, %v634
  %v658 = vsel %vm657, %v650, %v634
  %vm659 = vcmp.gt.s32.totalorder %v652, %v654
  %v660 = vsel %vm659, %v652, %v654
  %vm661 = vcmp.gt.s32.totalorder %v656, %v658
  %v662 = vsel %vm661, %v656, %v658
  %vm663 = vcmp.gt.s32.totalorder %v660, %v662
  %v664 = vsel %vm663, %v660, %v662
  %v665 = vrot.slane %v664, 4
  %vm666 = vcmp.gt.s32.totalorder %v664, %v665
  %v667 = vsel %vm666, %v664, %v665
  %v668 = vrot.slane %v667, 2
  %vm669 = vcmp.gt.s32.totalorder %v667, %v668
  %v670 = vsel %vm669, %v667, %v668
  %v671 = vrot.slane %v670, 1
  %vm672 = vcmp.gt.s32.totalorder %v670, %v671
  %v673 = vsel %vm672, %v670, %v671
  %v674 = vand.u32 %v673, 127
  %v675 = vsub.s32 127, %v674
  %676 = vst [vmem:[%s66] sm:$0x1] %v675
  %v677 = vlaneseq
  %v678 = vand.u32 %v677, 127
  %v679 = vadd.s32 %v120, %v678
  %vm680 = vcmp.lt.s32.totalorder %v679, 16
  %v681 = vsel %vm680, %v675, 128
  %vm682 = vcmp.eq.s32.totalorder %v103, %v681
  %vm683 = vcmp.eq.s32.totalorder %v104, %v681
  %vm684 = vcmp.eq.s32.totalorder %v105, %v681
  %vm685 = vcmp.eq.s32.totalorder %v106, %v681
  %vm686 = vcmp.eq.s32.totalorder %v107, %v681
  %vm687 = vcmp.eq.s32.totalorder %v108, %v681
  %vm688 = vcmp.eq.s32.totalorder %v109, %v681
  %vm689 = vcmp.eq.s32.totalorder %v110, %v681
  %vm690 = vcmp.eq.s32.totalorder %v111, %v681
  %vm691 = vcmp.eq.s32.totalorder %v112, %v681
  %vm692 = vcmp.eq.s32.totalorder %v113, %v681
  %vm693 = vcmp.eq.s32.totalorder %v114, %v681
  %vm694 = vcmp.eq.s32.totalorder %v115, %v681
  %vm695 = vcmp.eq.s32.totalorder %v116, %v681
  %vm696 = vcmp.eq.s32.totalorder %v117, %v681
  %vm697 = vcmp.eq.s32.totalorder %v118, %v681
  %p698 = scmp.eq.s32.totalorder 0, 0
  // Predicated region
  $region14: #{euclidean_codebook_forward.1} parent=0 // pred_check
    %p699 = pneg %p698
  $region15: #{euclidean_codebook_forward.1} parent=0 // pred_check_branch
    %701 = sbr.rel (%p699) target = $region17
  $region16: #{euclidean_codebook_forward.1} parent=0 // pred_region
    %vm702 = vcmask 7168
    %703 = vst.msk [vmem:[%s4] sm:$0xff] %vm702, 0.0
    %704 = vst.msk [vmem:[%s4 + $0x8] sm:$0xff] %vm702, 0.0
    %705 = vst.msk [vmem:[%s4 + $0x10] sm:$0xff] %vm702, 0.0
    %706 = vst.msk [vmem:[%s4 + $0x18] sm:$0xff] %vm702, 0.0
    %707 = vst.msk [vmem:[%s4 + $0x20] sm:$0xff] %vm702, 0.0
    %708 = vst.msk [vmem:[%s4 + $0x28] sm:$0xff] %vm702, 0.0
    %709 = vst.msk [vmem:[%s4 + $0x30] sm:$0xff] %vm702, 0.0
    %710 = vst.msk [vmem:[%s4 + $0x38] sm:$0xff] %vm702, 0.0
    %711 = vst.msk [vmem:[%s4 + $0x40] sm:$0xff] %vm702, 0.0
    %712 = vst.msk [vmem:[%s4 + $0x48] sm:$0xff] %vm702, 0.0
    %713 = vst.msk [vmem:[%s4 + $0x50] sm:$0xff] %vm702, 0.0
    %714 = vst.msk [vmem:[%s4 + $0x58] sm:$0xff] %vm702, 0.0
    %715 = vst.msk [vmem:[%s4 + $0x60] sm:$0xff] %vm702, 0.0
    %716 = vst.msk [vmem:[%s4 + $0x68] sm:$0xff] %vm702, 0.0
    %717 = vst.msk [vmem:[%s4 + $0x70] sm:$0xff] %vm702, 0.0
    %718 = vst.msk [vmem:[%s4 + $0x78] sm:$0xff] %vm702, 0.0
    %719 = vst.msk [vmem:[%s5] sm:$0xff] %vm313, 0.0
    %720 = vst.msk [vmem:[%s5 + $0x8] sm:$0xff] %vm313, 0.0
    %721 = vst.msk [vmem:[%s5 + $0x10] sm:$0xff] %vm313, 0.0
    %722 = vst.msk [vmem:[%s5 + $0x18] sm:$0xff] %vm313, 0.0
    %723 = vst.msk [vmem:[%s5 + $0x20] sm:$0xff] %vm313, 0.0
    %724 = vst.msk [vmem:[%s5 + $0x28] sm:$0xff] %vm313, 0.0
    %725 = vst.msk [vmem:[%s5 + $0x30] sm:$0xff] %vm313, 0.0
    %726 = vst.msk [vmem:[%s5 + $0x38] sm:$0xff] %vm313, 0.0
    %727 = vst.msk [vmem:[%s5 + $0x40] sm:$0xff] %vm313, 0.0
    %728 = vst.msk [vmem:[%s5 + $0x48] sm:$0xff] %vm313, 0.0
    %729 = vst.msk [vmem:[%s5 + $0x50] sm:$0xff] %vm313, 0.0
    %730 = vst.msk [vmem:[%s5 + $0x58] sm:$0xff] %vm313, 0.0
    %731 = vst.msk [vmem:[%s5 + $0x60] sm:$0xff] %vm313, 0.0
    %732 = vst.msk [vmem:[%s5 + $0x68] sm:$0xff] %vm313, 0.0
    %733 = vst.msk [vmem:[%s5 + $0x70] sm:$0xff] %vm313, 0.0
    %734 = vst.msk [vmem:[%s5 + $0x78] sm:$0xff] %vm313, 0.0
  $region17: #{euclidean_codebook_forward.1} parent=0 // pred_fallthru
    _
  %v735 = vsel %vm682, 1, 0
  %v736 = vsel %vm683, 1, 0
  %v737 = vsel %vm684, 1, 0
  %v738 = vsel %vm685, 1, 0
  %v739 = vsel %vm686, 1, 0
  %v740 = vsel %vm687, 1, 0
  %v741 = vsel %vm688, 1, 0
  %v742 = vsel %vm689, 1, 0
  %v743 = vsel %vm690, 1, 0
  %v744 = vsel %vm691, 1, 0
  %v745 = vsel %vm692, 1, 0
  %v746 = vsel %vm693, 1, 0
  %v747 = vsel %vm694, 1, 0
  %v748 = vsel %vm695, 1, 0
  %v749 = vsel %vm696, 1, 0
  %v750 = vsel %vm697, 1, 0
  %v751 = vcvt.s32.f32 %v735
  %v752 = vcvt.s32.f32 %v736
  %v753 = vcvt.s32.f32 %v737
  %v754 = vcvt.s32.f32 %v738
  %v755 = vcvt.s32.f32 %v739
  %v756 = vcvt.s32.f32 %v740
  %v757 = vcvt.s32.f32 %v741
  %v758 = vcvt.s32.f32 %v742
  %v759 = vcvt.s32.f32 %v743
  %v760 = vcvt.s32.f32 %v744
  %v761 = vcvt.s32.f32 %v745
  %v762 = vcvt.s32.f32 %v746
  %v763 = vcvt.s32.f32 %v747
  %v764 = vcvt.s32.f32 %v748
  %v765 = vcvt.s32.f32 %v749
  %v766 = vcvt.s32.f32 %v750
  %767 = vadd.xlane.f32.xlu0 %v751
  %v768 = vpop.xlane.xlu0 %767
  %769 = vadd.xlane.f32.xlu0 %v752
  %v770 = vpop.xlane.xlu0 %769
  %771 = vadd.xlane.f32.xlu0 %v753
  %v772 = vpop.xlane.xlu0 %771
  %773 = vadd.xlane.f32.xlu0 %v754
  %v774 = vpop.xlane.xlu0 %773
  %775 = vadd.xlane.f32.xlu0 %v755
  %v776 = vpop.xlane.xlu0 %775
  %777 = vadd.xlane.f32.xlu0 %v756
  %v778 = vpop.xlane.xlu0 %777
  %779 = vadd.xlane.f32.xlu0 %v757
  %v780 = vpop.xlane.xlu0 %779
  %781 = vadd.xlane.f32.xlu0 %v758
  %v782 = vpop.xlane.xlu0 %781
  %783 = vadd.xlane.f32.xlu0 %v759
  %v784 = vpop.xlane.xlu0 %783
  %785 = vadd.xlane.f32.xlu0 %v760
  %v786 = vpop.xlane.xlu0 %785
  %787 = vadd.xlane.f32.xlu0 %v761
  %v788 = vpop.xlane.xlu0 %787
  %789 = vadd.xlane.f32.xlu0 %v762
  %v790 = vpop.xlane.xlu0 %789
  %791 = vadd.xlane.f32.xlu0 %v763
  %v792 = vpop.xlane.xlu0 %791
  %793 = vadd.xlane.f32.xlu0 %v764
  %v794 = vpop.xlane.xlu0 %793
  %795 = vadd.xlane.f32.xlu0 %v765
  %v796 = vpop.xlane.xlu0 %795
  %797 = vadd.xlane.f32.xlu0 %v766
  %v798 = vpop.xlane.xlu0 %797
  %v799 = vld [vmem:[%s4] sm:$0xff]
  %v800 = vld [vmem:[%s4 + $0x8] sm:$0xff]
  %v801 = vld [vmem:[%s4 + $0x10] sm:$0xff]
  %v802 = vld [vmem:[%s4 + $0x18] sm:$0xff]
  %v803 = vld [vmem:[%s4 + $0x20] sm:$0xff]
  %v804 = vld [vmem:[%s4 + $0x28] sm:$0xff]
  %v805 = vld [vmem:[%s4 + $0x30] sm:$0xff]
  %v806 = vld [vmem:[%s4 + $0x38] sm:$0xff]
  %v807 = vld [vmem:[%s4 + $0x40] sm:$0xff]
  %v808 = vld [vmem:[%s4 + $0x48] sm:$0xff]
  %v809 = vld [vmem:[%s4 + $0x50] sm:$0xff]
  %v810 = vld [vmem:[%s4 + $0x58] sm:$0xff]
  %v811 = vld [vmem:[%s4 + $0x60] sm:$0xff]
  %v812 = vld [vmem:[%s4 + $0x68] sm:$0xff]
  %v813 = vld [vmem:[%s4 + $0x70] sm:$0xff]
  %v814 = vld [vmem:[%s4 + $0x78] sm:$0xff]
  %v815 = vadd.f32 %v799, %v768
  %v816 = vadd.f32 %v800, %v770
  %v817 = vadd.f32 %v801, %v772
  %v818 = vadd.f32 %v802, %v774
  %v819 = vadd.f32 %v803, %v776
  %v820 = vadd.f32 %v804, %v778
  %v821 = vadd.f32 %v805, %v780
  %v822 = vadd.f32 %v806, %v782
  %v823 = vadd.f32 %v807, %v784
  %v824 = vadd.f32 %v808, %v786
  %v825 = vadd.f32 %v809, %v788
  %v826 = vadd.f32 %v810, %v790
  %v827 = vadd.f32 %v811, %v792
  %v828 = vadd.f32 %v812, %v794
  %v829 = vadd.f32 %v813, %v796
  %v830 = vadd.f32 %v814, %v798
  %vm831 = vcmask 7168
  %832 = vst.msk [vmem:[%s4] sm:$0xff] %vm831, %v815
  %833 = vst.msk [vmem:[%s4 + $0x8] sm:$0xff] %vm831, %v816
  %834 = vst.msk [vmem:[%s4 + $0x10] sm:$0xff] %vm831, %v817
  %835 = vst.msk [vmem:[%s4 + $0x18] sm:$0xff] %vm831, %v818
  %836 = vst.msk [vmem:[%s4 + $0x20] sm:$0xff] %vm831, %v819
  %837 = vst.msk [vmem:[%s4 + $0x28] sm:$0xff] %vm831, %v820
  %838 = vst.msk [vmem:[%s4 + $0x30] sm:$0xff] %vm831, %v821
  %839 = vst.msk [vmem:[%s4 + $0x38] sm:$0xff] %vm831, %v822
  %840 = vst.msk [vmem:[%s4 + $0x40] sm:$0xff] %vm831, %v823
  %841 = vst.msk [vmem:[%s4 + $0x48] sm:$0xff] %vm831, %v824
  %842 = vst.msk [vmem:[%s4 + $0x50] sm:$0xff] %vm831, %v825
  %843 = vst.msk [vmem:[%s4 + $0x58] sm:$0xff] %vm831, %v826
  %844 = vst.msk [vmem:[%s4 + $0x60] sm:$0xff] %vm831, %v827
  %845 = vst.msk [vmem:[%s4 + $0x68] sm:$0xff] %vm831, %v828
  %846 = vst.msk [vmem:[%s4 + $0x70] sm:$0xff] %vm831, %v829
  %847 = vst.msk [vmem:[%s4 + $0x78] sm:$0xff] %vm831, %v830
  %v848 = vpack.c.bf16 %v752, %v751
  %v849 = vpack.c.bf16 %v754, %v753
  %v850 = vpack.c.bf16 %v756, %v755
  %v851 = vpack.c.bf16 %v758, %v757
  %v852 = vpack.c.bf16 %v760, %v759
  %v853 = vpack.c.bf16 %v762, %v761
  %v854 = vpack.c.bf16 %v764, %v763
  %v855 = vpack.c.bf16 %v766, %v765
  %864 = vmatpush.bf16.msra.mxu0 %v312
  %865 = vmatpush.bf16.msra.mxu0 %v311
  %866 = vmatpush.bf16.msra.mxu0 %v310
  %867 = vmatpush.bf16.msra.mxu0 %v309
  %868 = vmatpush.bf16.msra.mxu0 %v308
  %869 = vmatpush.bf16.msra.mxu0 %v307
  %870 = vmatpush.bf16.msra.mxu0 %v306
  %871 = vmatpush.bf16.msra.mxu0 %v305
  %872 = vmatmul.bf16.gmra.mxu0 %v848
  %v873 = vpop.f32.mrf.mxu0
  %v874 = vadd.f32 0.0, %v873
  %v875 = vpop.f32.mrf.mxu0
  %v876 = vadd.f32 0.0, %v875
  %877 = vmatmul.bf16.gmra.mxu0 %v849
  %v878 = vpop.f32.mrf.mxu0
  %v879 = vadd.f32 0.0, %v878
  %v880 = vpop.f32.mrf.mxu0
  %v881 = vadd.f32 0.0, %v880
  %882 = vmatmul.bf16.gmra.mxu0 %v850
  %v883 = vpop.f32.mrf.mxu0
  %v884 = vadd.f32 0.0, %v883
  %v885 = vpop.f32.mrf.mxu0
  %v886 = vadd.f32 0.0, %v885
  %887 = vmatmul.bf16.gmra.mxu0 %v851
  %v888 = vpop.f32.mrf.mxu0
  %v889 = vadd.f32 0.0, %v888
  %v890 = vpop.f32.mrf.mxu0
  %v891 = vadd.f32 0.0, %v890
  %892 = vmatmul.bf16.gmra.mxu0 %v852
  %v893 = vpop.f32.mrf.mxu0
  %v894 = vadd.f32 0.0, %v893
  %v895 = vpop.f32.mrf.mxu0
  %v896 = vadd.f32 0.0, %v895
  %897 = vmatmul.bf16.gmra.mxu0 %v853
  %v898 = vpop.f32.mrf.mxu0
  %v899 = vadd.f32 0.0, %v898
  %v900 = vpop.f32.mrf.mxu0
  %v901 = vadd.f32 0.0, %v900
  %902 = vmatmul.bf16.gmra.mxu0 %v854
  %v903 = vpop.f32.mrf.mxu0
  %v904 = vadd.f32 0.0, %v903
  %v905 = vpop.f32.mrf.mxu0
  %v906 = vadd.f32 0.0, %v905
  %907 = vmatmul.bf16.gmra.mxu0 %v855
  %v908 = vpop.f32.mrf.mxu0
  %v909 = vadd.f32 0.0, %v908
  %v910 = vpop.f32.mrf.mxu0
  %v911 = vadd.f32 0.0, %v910
  %912 = vdwg.mxu0
  %v913 = vld [vmem:[%s5] sm:$0xff]
  %v914 = vld [vmem:[%s5 + $0x8] sm:$0xff]
  %v915 = vld [vmem:[%s5 + $0x10] sm:$0xff]
  %v916 = vld [vmem:[%s5 + $0x18] sm:$0xff]
  %v917 = vld [vmem:[%s5 + $0x20] sm:$0xff]
  %v918 = vld [vmem:[%s5 + $0x28] sm:$0xff]
  %v919 = vld [vmem:[%s5 + $0x30] sm:$0xff]
  %v920 = vld [vmem:[%s5 + $0x38] sm:$0xff]
  %v921 = vld [vmem:[%s5 + $0x40] sm:$0xff]
  %v922 = vld [vmem:[%s5 + $0x48] sm:$0xff]
  %v923 = vld [vmem:[%s5 + $0x50] sm:$0xff]
  %v924 = vld [vmem:[%s5 + $0x58] sm:$0xff]
  %v925 = vld [vmem:[%s5 + $0x60] sm:$0xff]
  %v926 = vld [vmem:[%s5 + $0x68] sm:$0xff]
  %v927 = vld [vmem:[%s5 + $0x70] sm:$0xff]
  %v928 = vld [vmem:[%s5 + $0x78] sm:$0xff]
  %v929 = vadd.f32 %v913, %v874
  %v930 = vadd.f32 %v914, %v876
  %v931 = vadd.f32 %v915, %v879
  %v932 = vadd.f32 %v916, %v881
  %v933 = vadd.f32 %v917, %v884
  %v934 = vadd.f32 %v918, %v886
  %v935 = vadd.f32 %v919, %v889
  %v936 = vadd.f32 %v920, %v891
  %v937 = vadd.f32 %v921, %v894
  %v938 = vadd.f32 %v922, %v896
  %v939 = vadd.f32 %v923, %v899
  %v940 = vadd.f32 %v924, %v901
  %v941 = vadd.f32 %v925, %v904
  %v942 = vadd.f32 %v926, %v906
  %v943 = vadd.f32 %v927, %v909
  %v944 = vadd.f32 %v928, %v911
  %945 = vst.msk [vmem:[%s5] sm:$0xff] %vm313, %v929
  %946 = vst.msk [vmem:[%s5 + $0x8] sm:$0xff] %vm313, %v930
  %947 = vst.msk [vmem:[%s5 + $0x10] sm:$0xff] %vm313, %v931
  %948 = vst.msk [vmem:[%s5 + $0x18] sm:$0xff] %vm313, %v932
  %949 = vst.msk [vmem:[%s5 + $0x20] sm:$0xff] %vm313, %v933
  %950 = vst.msk [vmem:[%s5 + $0x28] sm:$0xff] %vm313, %v934
  %951 = vst.msk [vmem:[%s5 + $0x30] sm:$0xff] %vm313, %v935
  %952 = vst.msk [vmem:[%s5 + $0x38] sm:$0xff] %vm313, %v936
  %953 = vst.msk [vmem:[%s5 + $0x40] sm:$0xff] %vm313, %v937
  %954 = vst.msk [vmem:[%s5 + $0x48] sm:$0xff] %vm313, %v938
  %955 = vst.msk [vmem:[%s5 + $0x50] sm:$0xff] %vm313, %v939
  %956 = vst.msk [vmem:[%s5 + $0x58] sm:$0xff] %vm313, %v940
  %957 = vst.msk [vmem:[%s5 + $0x60] sm:$0xff] %vm313, %v941
  %958 = vst.msk [vmem:[%s5 + $0x68] sm:$0xff] %vm313, %v942
  %959 = vst.msk [vmem:[%s5 + $0x70] sm:$0xff] %vm313, %v943
  %960 = vst.msk [vmem:[%s5 + $0x78] sm:$0xff] %vm313, %v944
  %s961 = sadd.s32 0, 0
  %p962 = scmp.lt.s32.totalorder %s961, 0
  %s963 = scalar_select %p962, %s961, 0
  %s964 = scalar_lea.vmem %s3, %s963
  // Predicated region
  $region18: #{euclidean_codebook_forward.1} parent=0 // pred_check
    _
  $region19: #{euclidean_codebook_forward.1} parent=0 // pred_check_branch
    %966 = sbr.rel (0) target = $region21
  $region20: #{euclidean_codebook_forward.1} parent=0 // pred_region
    %s967 = sadd.s32 0, 0
  $region21: #{euclidean_codebook_forward.1} parent=0 // pred_fallthru
    _
  // Predicated region
  $region22: #{euclidean_codebook_forward.1} parent=0 // pred_check
    _
  $region23: #{euclidean_codebook_forward.1} parent=0 // pred_check_branch
    %969 = sbr.rel (0) target = $region25
  $region24: #{euclidean_codebook_forward.1} parent=0 // pred_region
    _
  $region25: #{euclidean_codebook_forward.1} parent=0 // pred_fallthru
    _
  // Predicated region
  $region26: #{euclidean_codebook_forward.1} parent=0 // pred_check
    _
  $region27: #{euclidean_codebook_forward.1} parent=0 // pred_check_branch
    %971 = sbr.rel (0) target = $region29
  $region28: #{euclidean_codebook_forward.1} parent=0 // pred_region
    _
  $region29: #{euclidean_codebook_forward.1} parent=0 // pred_fallthru
    _
  // Predicated region
  $region30: #{euclidean_codebook_forward.1} parent=0 // pred_check
    _
  $region31: #{euclidean_codebook_forward.1} parent=0 // pred_check_branch
    %973 = sbr.rel (0) target = $region33
  $region32: #{euclidean_codebook_forward.1} parent=0 // pred_region
    %s974 = sadd.s32 0, 0
    %p975 = scmp.lt.s32.totalorder %s974, 0
    %s976 = scalar_select %p975, %s974, 0
    %s977 = scalar_lea.vmem %s3, %s976
  $region33: #{euclidean_codebook_forward.1} parent=0 // pred_fallthru
    _
  // Predicated region
  $region34: #{euclidean_codebook_forward.1} parent=0 // pred_check
    _
  $region35: #{euclidean_codebook_forward.1} parent=0 // pred_check_branch
    %979 = sbr.rel (0) target = $region37
  $region36: #{euclidean_codebook_forward.1} parent=0 // pred_region
    _
  $region37: #{euclidean_codebook_forward.1} parent=0 // pred_fallthru
    _
  // Predicated region
  $region38: #{euclidean_codebook_forward.1} parent=0 // pred_check
    _
  $region39: #{euclidean_codebook_forward.1} parent=0 // pred_check_branch
    %981 = sbr.rel (0) target = $region41
  $region40: #{euclidean_codebook_forward.1} parent=0 // pred_region
    _
  $region41: #{euclidean_codebook_forward.1} parent=0 // pred_fallthru
    _

</llo_original>
